<compile_context>
chip_gen: v6e
topology: v6e:2x2x1
jax: 0.10.0
libtpu: 0.0.40
codegen_flags: <defaults>
</compile_context>

<pallas_src>
import jax
import jax.numpy as jnp
from jax.experimental import pallas as pl
from jax.experimental.pallas import tpu as pltpu


def encoder_kernel(wx_ref, x_ref, wih_ref, whh_ref, b_ref, weight_ref, enc_ref):
    T1, Bp, I = x_ref.shape          # time-major input: (T1, Bp, I)
    H = whh_ref.shape[0]             # w_hh^T: (H, 4H)

    x_all = x_ref[...]               # (T1, Bp, I)
    w_ih_t = wih_ref[...]            # (I, 4H)
    w_hh_t = whh_ref[...]            # (H, 4H)
    b = b_ref[...]                   # (1, 4H)  b_ih + b_hh

    # ---- loop-invariant attention (softmax shift-invariance kills the h/c/fcb
    # ---- terms): attn[b, i] = softmax_i( sum_t x[b, t, i] * w_x[t] )
    x_score = x_all[0] * wx_ref[0]                      # (Bp, I)
    for t in range(1, T1):
        x_score = x_score + x_all[t] * wx_ref[t]        # scalar (SMEM) * vreg
    score = x_score - jnp.max(x_score, axis=1, keepdims=True)
    p = jnp.exp(score)
    attn = p * pl.reciprocal(jnp.sum(p, axis=1, keepdims=True), approx=False)

    # ---- attention-weighted driving series for ALL steps, one full-block store
    x_att = attn[None, :, :] * x_all                     # (T1, Bp, I)
    weight_ref[...] = x_att

    # ---- input-side gate projection hoisted out of the recurrence:
    # one MXU call with M = T1*Bp instead of T1 tiny pushes; bias folded in once.
    gates_x = jnp.dot(x_att.reshape(T1 * Bp, I), w_ih_t,
                      preferred_element_type=jnp.float32) + b     # (T1*Bp, 4H)
    gates_x = gates_x.reshape(T1, Bp, 4 * H)

    # ---- recurrence: only h @ W_hh^T + activations remain on the serial path.
    # T1 is tiny (time_step-1 = 8) and static: fully unroll at trace time.
    h = jnp.zeros((Bp, H), jnp.float32)
    c = jnp.zeros((Bp, H), jnp.float32)
    hs = []
    for T in range(T1):
        gates = gates_x[T] + jnp.dot(h, w_hh_t,
                                     preferred_element_type=jnp.float32)  # (Bp, 4H)
        # two full-vreg activation passes (PyTorch gate order i, f, g, o)
        sig = jax.nn.sigmoid(gates)
        tg = jnp.tanh(gates)
        i_g = sig[:, 0 * H:1 * H]
        f_g = sig[:, 1 * H:2 * H]
        g_g = tg[:, 2 * H:3 * H]
        o_g = sig[:, 3 * H:4 * H]

        c = f_g * c + i_g * g_g
        h = o_g * jnp.tanh(c)
        hs.append(h)

    # single lane-dense (Bp, T1*H = 256) unmasked store
    enc_ref[...] = jnp.concatenate(hs, axis=1)


def encoder_forward(input_data, params):
    """Pallas wrapper.  input_data: (B, time_step-1, input_size) float32."""
    B, T1, I = input_data.shape
    fc_w, fc_b = params["fc_w"], params["fc_b"]          # (1, 2H+T1), (1,)  (fc_b unused: shift-invariant)
    w_ih, w_hh = params["w_ih"], params["w_hh"]          # (4H, I), (4H, H)
    b_ih, b_hh = params["b_ih"], params["b_hh"]          # (4H,), (4H,)
    H = w_hh.shape[1]

    # Parameter plumbing (plain JAX glue).
    wx = fc_w[0, 2 * H:]                                 # (T1,) time weights -> SMEM
    w_ih_t = jnp.asarray(w_ih.T)                         # (I, 4H)
    w_hh_t = jnp.asarray(w_hh.T)                         # (H, 4H)
    b = (b_ih + b_hh).reshape(1, 4 * H)                  # (1, 4H)

    # Time-major input; pad batch up to the 8-row sublane width (padded rows are
    # zero and sliced off afterwards).
    Bp = max(8, -(-B // 8) * 8)
    x_tm = jnp.transpose(input_data, (1, 0, 2))          # (T1, B, I)
    if Bp != B:
        x_tm = jnp.pad(x_tm, ((0, 0), (0, Bp - B), (0, 0)))

    vmem = pl.BlockSpec(memory_space=pltpu.MemorySpace.VMEM)
    smem = pl.BlockSpec(memory_space=pltpu.MemorySpace.SMEM)

    out_shapes = (
        jax.ShapeDtypeStruct((T1, Bp, I), jnp.float32),      # weight (time-major)
        jax.ShapeDtypeStruct((Bp, T1 * H), jnp.float32),     # encode_weight (lane-dense)
    )
    # Gridless: total live data is a few KiB; a parallel batch grid (for the two
    # v7x TensorCores) only pays off at much larger B.
    weight_tm, enc_flat = pl.pallas_call(
        encoder_kernel,
        out_shape=out_shapes,
        in_specs=[smem, vmem, vmem, vmem, vmem],
        out_specs=(vmem, vmem),
    )(wx, x_tm, w_ih_t, w_hh_t, b)

    # Back to the PyTorch (B, T1, .) layout, dropping batch padding.
    weight = jnp.transpose(weight_tm[:, :B, :], (1, 0, 2))       # (B, T1, I)
    encode_weight = enc_flat[:B].reshape(B, T1, H)               # (B, T1, H)
    return weight, encode_weight


def encoder_reference(x, params):
    """Pure-JAX reference mirroring the PyTorch forward, for verification."""
    B, T1, I = x.shape
    fc_w, fc_b = params["fc_w"], params["fc_b"]
    w_ih, w_hh, b_ih, b_hh = params["w_ih"], params["w_hh"], params["b_ih"], params["b_hh"]
    H = w_hh.shape[1]
    h = jnp.zeros((B, H), jnp.float32)
    c = jnp.zeros((B, H), jnp.float32)
    weights, encs = [], []
    x_perm = jnp.transpose(x, (0, 2, 1))                 # (B, I, T1)
    for T in range(T1):
        h_rep = jnp.broadcast_to(h[:, None, :], (B, I, H))
        c_rep = jnp.broadcast_to(c[:, None, :], (B, I, H))
        cat = jnp.concatenate([h_rep, c_rep, x_perm], axis=2)       # (B, I, 2H+T1)
        score = (cat.reshape(-1, 2 * H + T1) @ fc_w.T + fc_b).reshape(B, I)
        attn = jax.nn.softmax(score, axis=1)
        x_t = attn * x[:, T, :]
        gates = x_t @ w_ih.T + b_ih + h @ w_hh.T + b_hh
        i_g = jax.nn.sigmoid(gates[:, :H])
        f_g = jax.nn.sigmoid(gates[:, H:2 * H])
        g_g = jnp.tanh(gates[:, 2 * H:3 * H])
        o_g = jax.nn.sigmoid(gates[:, 3 * H:4 * H])
        c = f_g * c + i_g * g_g
        h = o_g * jnp.tanh(c)
        weights.append(x_t)
        encs.append(h)
    return jnp.stack(weights, axis=1), jnp.stack(encs, axis=1)


if __name__ == "__main__":
    # Small shapes consistent with the module.
    batch = 2
    input_size = 4
    hidden = 32
    time_step = 9            # forward loops over time_step - 1 = 8 steps
    T1 = time_step - 1
    out_features = 1

    key = jax.random.PRNGKey(0)
    kx, k1, k2, k3, k4, k5, k6 = jax.random.split(key, 7)

    x = jax.random.normal(kx, (batch, T1, input_size), jnp.float32)

    # Deterministic parameter init (PyTorch-default-like uniform ranges).
    k_fc = 1.0 / jnp.sqrt(2 * hidden + T1)
    k_lstm = 1.0 / jnp.sqrt(hidden)
    params = {
        "fc_w": jax.random.uniform(k1, (out_features, 2 * hidden + T1),
                                   jnp.float32, -k_fc, k_fc),
        "fc_b": jax.random.uniform(k2, (out_features,), jnp.float32, -k_fc, k_fc),
        "w_ih": jax.random.uniform(k3, (4 * hidden, input_size),
                                   jnp.float32, -k_lstm, k_lstm),
        "w_hh": jax.random.uniform(k4, (4 * hidden, hidden),
                                   jnp.float32, -k_lstm, k_lstm),
        "b_ih": jax.random.uniform(k5, (4 * hidden,), jnp.float32, -k_lstm, k_lstm),
        "b_hh": jax.random.uniform(k6, (4 * hidden,), jnp.float32, -k_lstm, k_lstm),
    }

    weight, encode_weight = jax.block_until_ready(encoder_forward(x, params))

    # Verify against the pure-JAX reference of the PyTorch forward.
    ref_weight, ref_enc = encoder_reference(x, params)
    assert weight.shape == (batch, T1, input_size)
    assert encode_weight.shape == (batch, T1, hidden)
    assert jnp.allclose(weight, ref_weight, atol=1e-5, rtol=1e-5)
    assert jnp.allclose(encode_weight, ref_enc, atol=1e-5, rtol=1e-5)

    print("KERNEL_OK")
</pallas_src>

<mosaic_0001>
module attributes {stable_mosaic.version = 11 : i64} {
  func.func @encoder_kernel(%arg0: memref<8xf32, #tpu.memory_space<smem>>, %arg1: memref<8x8x4xf32, #tpu.memory_space<vmem>>, %arg2: memref<4x128xf32, #tpu.memory_space<vmem>>, %arg3: memref<32x128xf32, #tpu.memory_space<vmem>>, %arg4: memref<1x128xf32, #tpu.memory_space<vmem>>, %arg5: memref<8x8x4xf32, #tpu.memory_space<vmem>>, %arg6: memref<8x256xf32, #tpu.memory_space<vmem>>) attributes {dimension_semantics = [], scalar_prefetch = 0 : i64, scratch_operands = 0 : i64, tpu.core_type = #tpu.core_type<tc>} {
    %c0 = arith.constant 0 : index
    %c0_0 = arith.constant 0 : index
    %c0_1 = arith.constant 0 : index
    %0 = vector.load %arg1[%c0, %c0_0, %c0_1] : memref<8x8x4xf32, #tpu.memory_space<vmem>>, vector<8x8x4xf32>
    %c0_2 = arith.constant 0 : index
    %c0_3 = arith.constant 0 : index
    %1 = vector.load %arg2[%c0_2, %c0_3] : memref<4x128xf32, #tpu.memory_space<vmem>>, vector<4x128xf32>
    %c0_4 = arith.constant 0 : index
    %c0_5 = arith.constant 0 : index
    %2 = vector.load %arg3[%c0_4, %c0_5] : memref<32x128xf32, #tpu.memory_space<vmem>>, vector<32x128xf32>
    %c0_6 = arith.constant 0 : index
    %c0_7 = arith.constant 0 : index
    %3 = vector.load %arg4[%c0_6, %c0_7] : memref<1x128xf32, #tpu.memory_space<vmem>>, vector<1x128xf32>
    %4 = vector.extract_strided_slice %0 {offsets = [0, 0, 0], sizes = [1, 8, 4], strides = [1, 1, 1]} : vector<8x8x4xf32> to vector<1x8x4xf32>
    %5 = vector.shape_cast %4 : vector<1x8x4xf32> to vector<8x4xf32>
    %c0_8 = arith.constant 0 : index
    %6 = memref.load %arg0[%c0_8] : memref<8xf32, #tpu.memory_space<smem>>
    %7 = vector.broadcast %6 : f32 to vector<8x4xf32>
    %8 = arith.mulf %5, %7 : vector<8x4xf32>
    %9 = vector.extract_strided_slice %0 {offsets = [1, 0, 0], sizes = [1, 8, 4], strides = [1, 1, 1]} : vector<8x8x4xf32> to vector<1x8x4xf32>
    %10 = vector.shape_cast %9 : vector<1x8x4xf32> to vector<8x4xf32>
    %c1 = arith.constant 1 : index
    %11 = memref.load %arg0[%c1] : memref<8xf32, #tpu.memory_space<smem>>
    %12 = vector.broadcast %11 : f32 to vector<8x4xf32>
    %13 = arith.mulf %10, %12 : vector<8x4xf32>
    %14 = arith.addf %8, %13 : vector<8x4xf32>
    %15 = vector.extract_strided_slice %0 {offsets = [2, 0, 0], sizes = [1, 8, 4], strides = [1, 1, 1]} : vector<8x8x4xf32> to vector<1x8x4xf32>
    %16 = vector.shape_cast %15 : vector<1x8x4xf32> to vector<8x4xf32>
    %c2 = arith.constant 2 : index
    %17 = memref.load %arg0[%c2] : memref<8xf32, #tpu.memory_space<smem>>
    %18 = vector.broadcast %17 : f32 to vector<8x4xf32>
    %19 = arith.mulf %16, %18 : vector<8x4xf32>
    %20 = arith.addf %14, %19 : vector<8x4xf32>
    %21 = vector.extract_strided_slice %0 {offsets = [3, 0, 0], sizes = [1, 8, 4], strides = [1, 1, 1]} : vector<8x8x4xf32> to vector<1x8x4xf32>
    %22 = vector.shape_cast %21 : vector<1x8x4xf32> to vector<8x4xf32>
    %c3 = arith.constant 3 : index
    %23 = memref.load %arg0[%c3] : memref<8xf32, #tpu.memory_space<smem>>
    %24 = vector.broadcast %23 : f32 to vector<8x4xf32>
    %25 = arith.mulf %22, %24 : vector<8x4xf32>
    %26 = arith.addf %20, %25 : vector<8x4xf32>
    %27 = vector.extract_strided_slice %0 {offsets = [4, 0, 0], sizes = [1, 8, 4], strides = [1, 1, 1]} : vector<8x8x4xf32> to vector<1x8x4xf32>
    %28 = vector.shape_cast %27 : vector<1x8x4xf32> to vector<8x4xf32>
    %c4 = arith.constant 4 : index
    %29 = memref.load %arg0[%c4] : memref<8xf32, #tpu.memory_space<smem>>
    %30 = vector.broadcast %29 : f32 to vector<8x4xf32>
    %31 = arith.mulf %28, %30 : vector<8x4xf32>
    %32 = arith.addf %26, %31 : vector<8x4xf32>
    %33 = vector.extract_strided_slice %0 {offsets = [5, 0, 0], sizes = [1, 8, 4], strides = [1, 1, 1]} : vector<8x8x4xf32> to vector<1x8x4xf32>
    %34 = vector.shape_cast %33 : vector<1x8x4xf32> to vector<8x4xf32>
    %c5 = arith.constant 5 : index
    %35 = memref.load %arg0[%c5] : memref<8xf32, #tpu.memory_space<smem>>
    %36 = vector.broadcast %35 : f32 to vector<8x4xf32>
    %37 = arith.mulf %34, %36 : vector<8x4xf32>
    %38 = arith.addf %32, %37 : vector<8x4xf32>
    %39 = vector.extract_strided_slice %0 {offsets = [6, 0, 0], sizes = [1, 8, 4], strides = [1, 1, 1]} : vector<8x8x4xf32> to vector<1x8x4xf32>
    %40 = vector.shape_cast %39 : vector<1x8x4xf32> to vector<8x4xf32>
    %c6 = arith.constant 6 : index
    %41 = memref.load %arg0[%c6] : memref<8xf32, #tpu.memory_space<smem>>
    %42 = vector.broadcast %41 : f32 to vector<8x4xf32>
    %43 = arith.mulf %40, %42 : vector<8x4xf32>
    %44 = arith.addf %38, %43 : vector<8x4xf32>
    %45 = vector.extract_strided_slice %0 {offsets = [7, 0, 0], sizes = [1, 8, 4], strides = [1, 1, 1]} : vector<8x8x4xf32> to vector<1x8x4xf32>
    %46 = vector.shape_cast %45 : vector<1x8x4xf32> to vector<8x4xf32>
    %c7 = arith.constant 7 : index
    %47 = memref.load %arg0[%c7] : memref<8xf32, #tpu.memory_space<smem>>
    %48 = vector.broadcast %47 : f32 to vector<8x4xf32>
    %49 = arith.mulf %46, %48 : vector<8x4xf32>
    %50 = arith.addf %44, %49 : vector<8x4xf32>
    %cst = arith.constant dense<0xFF800000> : vector<8xf32>
    %51 = vector.multi_reduction <maximumf>, %50, %cst [1] : vector<8x4xf32> to vector<8xf32>
    %52 = vector.shape_cast %51 : vector<8xf32> to vector<8x1xf32>
    %53 = vector.broadcast %52 : vector<8x1xf32> to vector<8x4xf32>
    %54 = arith.subf %50, %53 : vector<8x4xf32>
    %55 = math.exp %54 : vector<8x4xf32>
    %cst_9 = arith.constant dense<0.000000e+00> : vector<8xf32>
    %56 = vector.multi_reduction <add>, %55, %cst_9 [1] : vector<8x4xf32> to vector<8xf32>
    %57 = vector.shape_cast %56 : vector<8xf32> to vector<8x1xf32>
    %58 = tpu.reciprocal %57 : vector<8x1xf32> -> vector<8x1xf32>
    %59 = vector.broadcast %58 : vector<8x1xf32> to vector<8x4xf32>
    %60 = arith.mulf %55, %59 : vector<8x4xf32>
    %61 = vector.shape_cast %60 : vector<8x4xf32> to vector<1x8x4xf32>
    %62 = vector.broadcast %61 : vector<1x8x4xf32> to vector<8x8x4xf32>
    %63 = arith.mulf %62, %0 : vector<8x8x4xf32>
    %c0_10 = arith.constant 0 : index
    %c0_11 = arith.constant 0 : index
    %c0_12 = arith.constant 0 : index
    %64 = vector.load %arg5[%c0_10, %c0_11, %c0_12] : memref<8x8x4xf32, #tpu.memory_space<vmem>>, vector<8x8x4xf32>
    tpu.vector_store %arg5[%c0_10, %c0_11, %c0_12], %63 {strides = array<i32>} : memref<8x8x4xf32, #tpu.memory_space<vmem>>, vector<8x8x4xf32>,
    %65 = vector.shape_cast %63 : vector<8x8x4xf32> to vector<64x4xf32>
    %cst_13 = arith.constant dense<0.000000e+00> : vector<64x128xf32>
    %66 = tpu.matmul %65, %1, %cst_13 {dimension_numbers = #tpu.dot_dimension_numbers<[1], [0], [0], [1], [0, 0, 1, 1], [], []>} : vector<64x4xf32>, vector<4x128xf32>, vector<64x128xf32> -> vector<64x128xf32>
    %67 = vector.broadcast %3 : vector<1x128xf32> to vector<64x128xf32>
    %68 = arith.addf %66, %67 : vector<64x128xf32>
    %69 = vector.shape_cast %68 : vector<64x128xf32> to vector<8x8x128xf32>
    %cst_14 = arith.constant 0.000000e+00 : f32
    %70 = vector.broadcast %cst_14 : f32 to vector<8x32xf32>
    %cst_15 = arith.constant 0.000000e+00 : f32
    %71 = vector.broadcast %cst_15 : f32 to vector<8x32xf32>
    %72 = vector.extract_strided_slice %69 {offsets = [0, 0, 0], sizes = [1, 8, 128], strides = [1, 1, 1]} : vector<8x8x128xf32> to vector<1x8x128xf32>
    %73 = vector.shape_cast %72 : vector<1x8x128xf32> to vector<8x128xf32>
    %cst_16 = arith.constant dense<0.000000e+00> : vector<8x128xf32>
    %74 = tpu.matmul %70, %2, %cst_16 {dimension_numbers = #tpu.dot_dimension_numbers<[1], [0], [0], [1], [0, 0, 1, 1], [], []>} : vector<8x32xf32>, vector<32x128xf32>, vector<8x128xf32> -> vector<8x128xf32>
    %75 = arith.addf %73, %74 : vector<8x128xf32>
    %76 = arith.negf %75 : vector<8x128xf32>
    %77 = math.exp %76 : vector<8x128xf32>
    %cst_17 = arith.constant 1.000000e+00 : f32
    %78 = vector.broadcast %cst_17 : f32 to vector<8x128xf32>
    %79 = arith.addf %78, %77 : vector<8x128xf32>
    %80 = arith.divf %78, %79 : vector<8x128xf32>
    %81 = math.tanh %75 : vector<8x128xf32>
    %82 = vector.extract_strided_slice %80 {offsets = [0, 0], sizes = [8, 32], strides = [1, 1]} : vector<8x128xf32> to vector<8x32xf32>
    %83 = vector.extract_strided_slice %80 {offsets = [0, 32], sizes = [8, 32], strides = [1, 1]} : vector<8x128xf32> to vector<8x32xf32>
    %84 = vector.extract_strided_slice %81 {offsets = [0, 64], sizes = [8, 32], strides = [1, 1]} : vector<8x128xf32> to vector<8x32xf32>
    %85 = vector.extract_strided_slice %80 {offsets = [0, 96], sizes = [8, 32], strides = [1, 1]} : vector<8x128xf32> to vector<8x32xf32>
    %86 = arith.mulf %83, %71 : vector<8x32xf32>
    %87 = arith.mulf %82, %84 : vector<8x32xf32>
    %88 = arith.addf %86, %87 : vector<8x32xf32>
    %89 = math.tanh %88 : vector<8x32xf32>
    %90 = arith.mulf %85, %89 : vector<8x32xf32>
    %91 = vector.extract_strided_slice %69 {offsets = [1, 0, 0], sizes = [1, 8, 128], strides = [1, 1, 1]} : vector<8x8x128xf32> to vector<1x8x128xf32>
    %92 = vector.shape_cast %91 : vector<1x8x128xf32> to vector<8x128xf32>
    %cst_18 = arith.constant dense<0.000000e+00> : vector<8x128xf32>
    %93 = tpu.matmul %90, %2, %cst_18 {dimension_numbers = #tpu.dot_dimension_numbers<[1], [0], [0], [1], [0, 0, 1, 1], [], []>} : vector<8x32xf32>, vector<32x128xf32>, vector<8x128xf32> -> vector<8x128xf32>
    %94 = arith.addf %92, %93 : vector<8x128xf32>
    %95 = arith.negf %94 : vector<8x128xf32>
    %96 = math.exp %95 : vector<8x128xf32>
    %cst_19 = arith.constant 1.000000e+00 : f32
    %97 = vector.broadcast %cst_19 : f32 to vector<8x128xf32>
    %98 = arith.addf %97, %96 : vector<8x128xf32>
    %99 = arith.divf %97, %98 : vector<8x128xf32>
    %100 = math.tanh %94 : vector<8x128xf32>
    %101 = vector.extract_strided_slice %99 {offsets = [0, 0], sizes = [8, 32], strides = [1, 1]} : vector<8x128xf32> to vector<8x32xf32>
    %102 = vector.extract_strided_slice %99 {offsets = [0, 32], sizes = [8, 32], strides = [1, 1]} : vector<8x128xf32> to vector<8x32xf32>
    %103 = vector.extract_strided_slice %100 {offsets = [0, 64], sizes = [8, 32], strides = [1, 1]} : vector<8x128xf32> to vector<8x32xf32>
    %104 = vector.extract_strided_slice %99 {offsets = [0, 96], sizes = [8, 32], strides = [1, 1]} : vector<8x128xf32> to vector<8x32xf32>
    %105 = arith.mulf %102, %88 : vector<8x32xf32>
    %106 = arith.mulf %101, %103 : vector<8x32xf32>
    %107 = arith.addf %105, %106 : vector<8x32xf32>
    %108 = math.tanh %107 : vector<8x32xf32>
    %109 = arith.mulf %104, %108 : vector<8x32xf32>
    %110 = vector.extract_strided_slice %69 {offsets = [2, 0, 0], sizes = [1, 8, 128], strides = [1, 1, 1]} : vector<8x8x128xf32> to vector<1x8x128xf32>
    %111 = vector.shape_cast %110 : vector<1x8x128xf32> to vector<8x128xf32>
    %cst_20 = arith.constant dense<0.000000e+00> : vector<8x128xf32>
    %112 = tpu.matmul %109, %2, %cst_20 {dimension_numbers = #tpu.dot_dimension_numbers<[1], [0], [0], [1], [0, 0, 1, 1], [], []>} : vector<8x32xf32>, vector<32x128xf32>, vector<8x128xf32> -> vector<8x128xf32>
    %113 = arith.addf %111, %112 : vector<8x128xf32>
    %114 = arith.negf %113 : vector<8x128xf32>
    %115 = math.exp %114 : vector<8x128xf32>
    %cst_21 = arith.constant 1.000000e+00 : f32
    %116 = vector.broadcast %cst_21 : f32 to vector<8x128xf32>
    %117 = arith.addf %116, %115 : vector<8x128xf32>
    %118 = arith.divf %116, %117 : vector<8x128xf32>
    %119 = math.tanh %113 : vector<8x128xf32>
    %120 = vector.extract_strided_slice %118 {offsets = [0, 0], sizes = [8, 32], strides = [1, 1]} : vector<8x128xf32> to vector<8x32xf32>
    %121 = vector.extract_strided_slice %118 {offsets = [0, 32], sizes = [8, 32], strides = [1, 1]} : vector<8x128xf32> to vector<8x32xf32>
    %122 = vector.extract_strided_slice %119 {offsets = [0, 64], sizes = [8, 32], strides = [1, 1]} : vector<8x128xf32> to vector<8x32xf32>
    %123 = vector.extract_strided_slice %118 {offsets = [0, 96], sizes = [8, 32], strides = [1, 1]} : vector<8x128xf32> to vector<8x32xf32>
    %124 = arith.mulf %121, %107 : vector<8x32xf32>
    %125 = arith.mulf %120, %122 : vector<8x32xf32>
    %126 = arith.addf %124, %125 : vector<8x32xf32>
    %127 = math.tanh %126 : vector<8x32xf32>
    %128 = arith.mulf %123, %127 : vector<8x32xf32>
    %129 = vector.extract_strided_slice %69 {offsets = [3, 0, 0], sizes = [1, 8, 128], strides = [1, 1, 1]} : vector<8x8x128xf32> to vector<1x8x128xf32>
    %130 = vector.shape_cast %129 : vector<1x8x128xf32> to vector<8x128xf32>
    %cst_22 = arith.constant dense<0.000000e+00> : vector<8x128xf32>
    %131 = tpu.matmul %128, %2, %cst_22 {dimension_numbers = #tpu.dot_dimension_numbers<[1], [0], [0], [1], [0, 0, 1, 1], [], []>} : vector<8x32xf32>, vector<32x128xf32>, vector<8x128xf32> -> vector<8x128xf32>
    %132 = arith.addf %130, %131 : vector<8x128xf32>
    %133 = arith.negf %132 : vector<8x128xf32>
    %134 = math.exp %133 : vector<8x128xf32>
    %cst_23 = arith.constant 1.000000e+00 : f32
    %135 = vector.broadcast %cst_23 : f32 to vector<8x128xf32>
    %136 = arith.addf %135, %134 : vector<8x128xf32>
    %137 = arith.divf %135, %136 : vector<8x128xf32>
    %138 = math.tanh %132 : vector<8x128xf32>
    %139 = vector.extract_strided_slice %137 {offsets = [0, 0], sizes = [8, 32], strides = [1, 1]} : vector<8x128xf32> to vector<8x32xf32>
    %140 = vector.extract_strided_slice %137 {offsets = [0, 32], sizes = [8, 32], strides = [1, 1]} : vector<8x128xf32> to vector<8x32xf32>
    %141 = vector.extract_strided_slice %138 {offsets = [0, 64], sizes = [8, 32], strides = [1, 1]} : vector<8x128xf32> to vector<8x32xf32>
    %142 = vector.extract_strided_slice %137 {offsets = [0, 96], sizes = [8, 32], strides = [1, 1]} : vector<8x128xf32> to vector<8x32xf32>
    %143 = arith.mulf %140, %126 : vector<8x32xf32>
    %144 = arith.mulf %139, %141 : vector<8x32xf32>
    %145 = arith.addf %143, %144 : vector<8x32xf32>
    %146 = math.tanh %145 : vector<8x32xf32>
    %147 = arith.mulf %142, %146 : vector<8x32xf32>
    %148 = vector.extract_strided_slice %69 {offsets = [4, 0, 0], sizes = [1, 8, 128], strides = [1, 1, 1]} : vector<8x8x128xf32> to vector<1x8x128xf32>
    %149 = vector.shape_cast %148 : vector<1x8x128xf32> to vector<8x128xf32>
    %cst_24 = arith.constant dense<0.000000e+00> : vector<8x128xf32>
    %150 = tpu.matmul %147, %2, %cst_24 {dimension_numbers = #tpu.dot_dimension_numbers<[1], [0], [0], [1], [0, 0, 1, 1], [], []>} : vector<8x32xf32>, vector<32x128xf32>, vector<8x128xf32> -> vector<8x128xf32>
    %151 = arith.addf %149, %150 : vector<8x128xf32>
    %152 = arith.negf %151 : vector<8x128xf32>
    %153 = math.exp %152 : vector<8x128xf32>
    %cst_25 = arith.constant 1.000000e+00 : f32
    %154 = vector.broadcast %cst_25 : f32 to vector<8x128xf32>
    %155 = arith.addf %154, %153 : vector<8x128xf32>
    %156 = arith.divf %154, %155 : vector<8x128xf32>
    %157 = math.tanh %151 : vector<8x128xf32>
    %158 = vector.extract_strided_slice %156 {offsets = [0, 0], sizes = [8, 32], strides = [1, 1]} : vector<8x128xf32> to vector<8x32xf32>
    %159 = vector.extract_strided_slice %156 {offsets = [0, 32], sizes = [8, 32], strides = [1, 1]} : vector<8x128xf32> to vector<8x32xf32>
    %160 = vector.extract_strided_slice %157 {offsets = [0, 64], sizes = [8, 32], strides = [1, 1]} : vector<8x128xf32> to vector<8x32xf32>
    %161 = vector.extract_strided_slice %156 {offsets = [0, 96], sizes = [8, 32], strides = [1, 1]} : vector<8x128xf32> to vector<8x32xf32>
    %162 = arith.mulf %159, %145 : vector<8x32xf32>
    %163 = arith.mulf %158, %160 : vector<8x32xf32>
    %164 = arith.addf %162, %163 : vector<8x32xf32>
    %165 = math.tanh %164 : vector<8x32xf32>
    %166 = arith.mulf %161, %165 : vector<8x32xf32>
    %167 = vector.extract_strided_slice %69 {offsets = [5, 0, 0], sizes = [1, 8, 128], strides = [1, 1, 1]} : vector<8x8x128xf32> to vector<1x8x128xf32>
    %168 = vector.shape_cast %167 : vector<1x8x128xf32> to vector<8x128xf32>
    %cst_26 = arith.constant dense<0.000000e+00> : vector<8x128xf32>
    %169 = tpu.matmul %166, %2, %cst_26 {dimension_numbers = #tpu.dot_dimension_numbers<[1], [0], [0], [1], [0, 0, 1, 1], [], []>} : vector<8x32xf32>, vector<32x128xf32>, vector<8x128xf32> -> vector<8x128xf32>
    %170 = arith.addf %168, %169 : vector<8x128xf32>
    %171 = arith.negf %170 : vector<8x128xf32>
    %172 = math.exp %171 : vector<8x128xf32>
    %cst_27 = arith.constant 1.000000e+00 : f32
    %173 = vector.broadcast %cst_27 : f32 to vector<8x128xf32>
    %174 = arith.addf %173, %172 : vector<8x128xf32>
    %175 = arith.divf %173, %174 : vector<8x128xf32>
    %176 = math.tanh %170 : vector<8x128xf32>
    %177 = vector.extract_strided_slice %175 {offsets = [0, 0], sizes = [8, 32], strides = [1, 1]} : vector<8x128xf32> to vector<8x32xf32>
    %178 = vector.extract_strided_slice %175 {offsets = [0, 32], sizes = [8, 32], strides = [1, 1]} : vector<8x128xf32> to vector<8x32xf32>
    %179 = vector.extract_strided_slice %176 {offsets = [0, 64], sizes = [8, 32], strides = [1, 1]} : vector<8x128xf32> to vector<8x32xf32>
    %180 = vector.extract_strided_slice %175 {offsets = [0, 96], sizes = [8, 32], strides = [1, 1]} : vector<8x128xf32> to vector<8x32xf32>
    %181 = arith.mulf %178, %164 : vector<8x32xf32>
    %182 = arith.mulf %177, %179 : vector<8x32xf32>
    %183 = arith.addf %181, %182 : vector<8x32xf32>
    %184 = math.tanh %183 : vector<8x32xf32>
    %185 = arith.mulf %180, %184 : vector<8x32xf32>
    %186 = vector.extract_strided_slice %69 {offsets = [6, 0, 0], sizes = [1, 8, 128], strides = [1, 1, 1]} : vector<8x8x128xf32> to vector<1x8x128xf32>
    %187 = vector.shape_cast %186 : vector<1x8x128xf32> to vector<8x128xf32>
    %cst_28 = arith.constant dense<0.000000e+00> : vector<8x128xf32>
    %188 = tpu.matmul %185, %2, %cst_28 {dimension_numbers = #tpu.dot_dimension_numbers<[1], [0], [0], [1], [0, 0, 1, 1], [], []>} : vector<8x32xf32>, vector<32x128xf32>, vector<8x128xf32> -> vector<8x128xf32>
    %189 = arith.addf %187, %188 : vector<8x128xf32>
    %190 = arith.negf %189 : vector<8x128xf32>
    %191 = math.exp %190 : vector<8x128xf32>
    %cst_29 = arith.constant 1.000000e+00 : f32
    %192 = vector.broadcast %cst_29 : f32 to vector<8x128xf32>
    %193 = arith.addf %192, %191 : vector<8x128xf32>
    %194 = arith.divf %192, %193 : vector<8x128xf32>
    %195 = math.tanh %189 : vector<8x128xf32>
    %196 = vector.extract_strided_slice %194 {offsets = [0, 0], sizes = [8, 32], strides = [1, 1]} : vector<8x128xf32> to vector<8x32xf32>
    %197 = vector.extract_strided_slice %194 {offsets = [0, 32], sizes = [8, 32], strides = [1, 1]} : vector<8x128xf32> to vector<8x32xf32>
    %198 = vector.extract_strided_slice %195 {offsets = [0, 64], sizes = [8, 32], strides = [1, 1]} : vector<8x128xf32> to vector<8x32xf32>
    %199 = vector.extract_strided_slice %194 {offsets = [0, 96], sizes = [8, 32], strides = [1, 1]} : vector<8x128xf32> to vector<8x32xf32>
    %200 = arith.mulf %197, %183 : vector<8x32xf32>
    %201 = arith.mulf %196, %198 : vector<8x32xf32>
    %202 = arith.addf %200, %201 : vector<8x32xf32>
    %203 = math.tanh %202 : vector<8x32xf32>
    %204 = arith.mulf %199, %203 : vector<8x32xf32>
    %205 = vector.extract_strided_slice %69 {offsets = [7, 0, 0], sizes = [1, 8, 128], strides = [1, 1, 1]} : vector<8x8x128xf32> to vector<1x8x128xf32>
    %206 = vector.shape_cast %205 : vector<1x8x128xf32> to vector<8x128xf32>
    %cst_30 = arith.constant dense<0.000000e+00> : vector<8x128xf32>
    %207 = tpu.matmul %204, %2, %cst_30 {dimension_numbers = #tpu.dot_dimension_numbers<[1], [0], [0], [1], [0, 0, 1, 1], [], []>} : vector<8x32xf32>, vector<32x128xf32>, vector<8x128xf32> -> vector<8x128xf32>
    %208 = arith.addf %206, %207 : vector<8x128xf32>
    %209 = arith.negf %208 : vector<8x128xf32>
    %210 = math.exp %209 : vector<8x128xf32>
    %cst_31 = arith.constant 1.000000e+00 : f32
    %211 = vector.broadcast %cst_31 : f32 to vector<8x128xf32>
    %212 = arith.addf %211, %210 : vector<8x128xf32>
    %213 = arith.divf %211, %212 : vector<8x128xf32>
    %214 = math.tanh %208 : vector<8x128xf32>
    %215 = vector.extract_strided_slice %213 {offsets = [0, 0], sizes = [8, 32], strides = [1, 1]} : vector<8x128xf32> to vector<8x32xf32>
    %216 = vector.extract_strided_slice %213 {offsets = [0, 32], sizes = [8, 32], strides = [1, 1]} : vector<8x128xf32> to vector<8x32xf32>
    %217 = vector.extract_strided_slice %214 {offsets = [0, 64], sizes = [8, 32], strides = [1, 1]} : vector<8x128xf32> to vector<8x32xf32>
    %218 = vector.extract_strided_slice %213 {offsets = [0, 96], sizes = [8, 32], strides = [1, 1]} : vector<8x128xf32> to vector<8x32xf32>
    %219 = arith.mulf %216, %202 : vector<8x32xf32>
    %220 = arith.mulf %215, %217 : vector<8x32xf32>
    %221 = arith.addf %219, %220 : vector<8x32xf32>
    %222 = math.tanh %221 : vector<8x32xf32>
    %223 = arith.mulf %218, %222 : vector<8x32xf32>
    %224 = tpu.concatenate %90, %109, %128, %147, %166, %185, %204, %223 in 1 : vector<8x32xf32>, vector<8x32xf32>, vector<8x32xf32>, vector<8x32xf32>, vector<8x32xf32>, vector<8x32xf32>, vector<8x32xf32>, vector<8x32xf32> -> vector<8x256xf32>
    %c0_32 = arith.constant 0 : index
    %c0_33 = arith.constant 0 : index
    %225 = vector.load %arg6[%c0_32, %c0_33] : memref<8x256xf32, #tpu.memory_space<vmem>>, vector<8x256xf32>
    tpu.vector_store %arg6[%c0_32, %c0_33], %224 {strides = array<i32>} : memref<8x256xf32, #tpu.memory_space<vmem>>, vector<8x256xf32>,
    return
  }
}

</mosaic_0001>

<llo_original>
// kernel: tpu_custom_call.1
$region0: #{tpu_custom_call.1}
  #allocation0 [shape = 'u32[]', space=smem, size = 0x4, offset = 0x4, fixed_abs, tag = 'smem constant byte address 0x4 - core index']
  #allocation1 [shape = 'u32[144,128]{1,0:T(1,128)}', space=vmem, size = 0x12000, scoped, tag = 'internal scratch']
  %s0 = inlined_call_operand.vmem [shape: f32[8], index: 0, kind: input, shape index: {}]
  %s1 = inlined_call_operand.vmem [shape: f32[8,8,4], index: 1, kind: input, shape index: {}]
  %s2 = inlined_call_operand.vmem [shape: f32[4,128], index: 2, kind: input, shape index: {}]
  %s3 = inlined_call_operand.vmem [shape: f32[32,128], index: 3, kind: input, shape index: {}]
  %s4 = inlined_call_operand.vmem [shape: f32[1,128], index: 4, kind: input, shape index: {}]
  %s5 = inlined_call_operand.vmem [shape: f32[8,8,4], index: 5, kind: output, shape index: {0}]
  %s6 = inlined_call_operand.hbm [shape: f32[8,256], index: 6, kind: output, shape index: {1}]
  %7 = xla_tuple %s5, %s6
  %s8 = sld [smem:[#allocation0]]
  $region42: #{tpu_custom_call.1} parent=0
    _
  %s10 = ssub.s32 1, %s8
  %s11 = scalar_select 0, %s10, %s8
  $region1: #{tpu_custom_call.1} parent=0
    #allocation2 [shape = 'u8[512]{0}', space=smem, size = 0x200, scoped, tag = 'input window, operand 0, single buffered']
    #allocation3 [shape = 's32[1]{0}', space=sflag, size = 0x4, scoped, tag = 'scoped memory for tpu_custom_call.1']
    #allocation4 [shape = 's32[1]{0}', space=sflag, size = 0x4, scoped, tag = 'scoped memory for tpu_custom_call.1']
    #allocation5 [shape = 'u8[8192]{0}', space=vmem, size = 0x2000, scoped, tag = 'output window, operand 1, single buffered']
    %12 = vsyncpa [#allocation4], 0
    %13 = vsyncpa [#allocation3], 0
    // Predicated region
    $region2: #{tpu_custom_call.1} parent=1 // pred_check
      _
    $region3: #{tpu_custom_call.1} parent=1 // pred_check_branch
      %15 = sbr.rel (0) target = $region5
    $region4: #{tpu_custom_call.1} parent=1 // pred_region
      %s17 = ssub.s32 16, 16
      %18 = vsyncadd [#allocation4], %s17
      %s20 = sshll.u32 %s0, 4
      %s21 = int_to_ptr.vmem [resolvable:$true] %s20
      %23 = dma.vmem_to_smem %s21, 16, [#allocation2], [#allocation4]
    $region5: #{tpu_custom_call.1} parent=1 // pred_fallthru
      _
    // Predicated region
    $region6: #{tpu_custom_call.1} parent=1 // pred_check
      _
    $region7: #{tpu_custom_call.1} parent=1 // pred_check_branch
      %25 = sbr.rel (0) target = $region9
    $region8: #{tpu_custom_call.1} parent=1 // pred_region
      _
    $region9: #{tpu_custom_call.1} parent=1 // pred_fallthru
      _
    // Predicated region
    $region10: #{tpu_custom_call.1} parent=1 // pred_check
      _
    $region11: #{tpu_custom_call.1} parent=1 // pred_check_branch
      %27 = sbr.rel (0) target = $region13
    $region12: #{tpu_custom_call.1} parent=1 // pred_region
      _
    $region13: #{tpu_custom_call.1} parent=1 // pred_fallthru
      _
    // Predicated region
    $region14: #{tpu_custom_call.1} parent=1 // pred_check
      _
    $region15: #{tpu_custom_call.1} parent=1 // pred_check_branch
      %29 = sbr.rel (0) target = $region17
    $region16: #{tpu_custom_call.1} parent=1 // pred_region
      _
    $region17: #{tpu_custom_call.1} parent=1 // pred_fallthru
      _
    // Predicated region
    $region18: #{tpu_custom_call.1} parent=1 // pred_check
      _
    $region19: #{tpu_custom_call.1} parent=1 // pred_check_branch
      %31 = sbr.rel (0) target = $region21
    $region20: #{tpu_custom_call.1} parent=1 // pred_region
      _
    $region21: #{tpu_custom_call.1} parent=1 // pred_fallthru
      _
    // Predicated region
    $region22: #{tpu_custom_call.1} parent=1 // pred_check
      _
    $region23: #{tpu_custom_call.1} parent=1 // pred_check_branch
      %33 = sbr.rel (0) target = $region25
    $region24: #{tpu_custom_call.1} parent=1 // pred_region
      %34 = dma.done [#allocation4], 16
    $region25: #{tpu_custom_call.1} parent=1 // pred_fallthru
      _
    %35 = sfence
    %v36 = vld [vmem:[%s1] sm:$0xff]
    %v37 = vld [vmem:[%s1 + $0x8] sm:$0xff]
    %v38 = vld [vmem:[%s1 + $0x10] sm:$0xff]
    %v39 = vld [vmem:[%s1 + $0x18] sm:$0xff]
    %v40 = vld [vmem:[%s1 + $0x20] sm:$0xff]
    %v41 = vld [vmem:[%s1 + $0x28] sm:$0xff]
    %v42 = vld [vmem:[%s1 + $0x30] sm:$0xff]
    %v43 = vld [vmem:[%s1 + $0x38] sm:$0xff]
    %v44 = vld [vmem:[%s2] sm:$0xf]
    %v45 = vld [vmem:[%s3] sm:$0xff]
    %v46 = vld [vmem:[%s3 + $0x8] sm:$0xff]
    %v47 = vld [vmem:[%s3 + $0x10] sm:$0xff]
    %v48 = vld [vmem:[%s3 + $0x18] sm:$0xff]
    %v49 = vld [vmem:[%s4] sm:$0x1]
    %s50 = sld [smem:[#allocation2]]
    %v51 = vstv %s50
    %v52 = vmul.f32 %v36, %v51
    %s53 = sld [smem:[#allocation2 + $0x1]]
    %v54 = vstv %s53
    %v55 = vmul.f32 %v37, %v54
    %v56 = vadd.f32 %v52, %v55
    %s57 = sld [smem:[#allocation2 + $0x2]]
    %v58 = vstv %s57
    %v59 = vmul.f32 %v38, %v58
    %v60 = vadd.f32 %v56, %v59
    %s61 = sld [smem:[#allocation2 + $0x3]]
    %v62 = vstv %s61
    %v63 = vmul.f32 %v39, %v62
    %v64 = vadd.f32 %v60, %v63
    %s65 = sld [smem:[#allocation2 + $0x4]]
    %v66 = vstv %s65
    %v67 = vmul.f32 %v40, %v66
    %v68 = vadd.f32 %v64, %v67
    %s69 = sld [smem:[#allocation2 + $0x5]]
    %v70 = vstv %s69
    %v71 = vmul.f32 %v41, %v70
    %v72 = vadd.f32 %v68, %v71
    %s73 = sld [smem:[#allocation2 + $0x6]]
    %v74 = vstv %s73
    %v75 = vmul.f32 %v42, %v74
    %v76 = vadd.f32 %v72, %v75
    %s77 = sld [smem:[#allocation2 + $0x7]]
    %v78 = vstv %s77
    %v79 = vmul.f32 %v43, %v78
    %v80 = vadd.f32 %v76, %v79
    %vm81 = vcmask 31744
    %v82 = vsel %vm81, %v80, -inf
    %83 = vmax.xlane.f32.xlu0 %v82
    %v84 = vpop.xlane.xlu0 %83
    %v85 = vsub.f32 %v80, %v84
    %v86 = vmul.f32 %v85, 1.442695
    %v87 = vpow.pop %v86
    %v88 = vsel %vm81, %v87, 0.0
    %89 = vadd.xlane.f32.xlu0 %v88
    %v90 = vpop.xlane.xlu0 %89
    %v91 = vrcp.pop %v90
    %v92 = vmul.f32 %v87, %v91
    %v93 = vmul.f32 %v92, %v36
    %v94 = vmul.f32 %v92, %v37
    %v95 = vmul.f32 %v92, %v38
    %v96 = vmul.f32 %v92, %v39
    %v97 = vmul.f32 %v92, %v40
    %v98 = vmul.f32 %v92, %v41
    %v99 = vmul.f32 %v92, %v42
    %v100 = vmul.f32 %v92, %v43
    %101 = vst.msk [vmem:[%s5] sm:$0xff] %vm81, %v93
    %102 = vst.msk [vmem:[%s5 + $0x8] sm:$0xff] %vm81, %v94
    %103 = vst.msk [vmem:[%s5 + $0x10] sm:$0xff] %vm81, %v95
    %104 = vst.msk [vmem:[%s5 + $0x18] sm:$0xff] %vm81, %v96
    %105 = vst.msk [vmem:[%s5 + $0x20] sm:$0xff] %vm81, %v97
    %106 = vst.msk [vmem:[%s5 + $0x28] sm:$0xff] %vm81, %v98
    %107 = vst.msk [vmem:[%s5 + $0x30] sm:$0xff] %vm81, %v99
    %108 = vst.msk [vmem:[%s5 + $0x38] sm:$0xff] %vm81, %v100
    %v110 = vlaneseq
    %v111 = vshrl.u32 %v110, 7
    %v112 = vsub.s32 0, %v111
    %v113 = vrot.slane %v49, %v112
    %v116 = vsel %vm81, %v93, 0
    %v119 = vsel %vm81, %v94, 0
    %v122 = vsel %vm81, %v95, 0
    %v125 = vsel %vm81, %v96, 0
    %v128 = vsel %vm81, %v97, 0
    %v131 = vsel %vm81, %v98, 0
    %v134 = vsel %vm81, %v99, 0
    %v137 = vsel %vm81, %v100, 0
    %vm139 = vcmask 1043456
    %v141 = vsel %vm139, %v44, 0
    %143 = vmatprep.subr.mxu0 0.0
    %144 = vmatpush1.msra.mxu0 0.0
    %145 = vmatprep.subr.mxu0 0.0
    %146 = vmatpush1.msra.mxu0 0.0
    %147 = vmatprep.subr.mxu0 0.0
    %148 = vmatpush1.msra.mxu0 0.0
    %149 = vmatprep.subr.mxu0 0.0
    %150 = vmatpush1.msra.mxu0 0.0
    %151 = vmatprep.subr.mxu0 0.0
    %152 = vmatpush1.msra.mxu0 0.0
    %153 = vmatprep.subr.mxu0 0.0
    %154 = vmatpush1.msra.mxu0 0.0
    %155 = vmatprep.subr.mxu0 0.0
    %156 = vmatpush1.msra.mxu0 0.0
    %157 = vmatprep.subr.mxu0 0.0
    %158 = vmatpush1.msra.mxu0 0.0
    %159 = vmatprep.subr.mxu0 0.0
    %160 = vmatpush1.msra.mxu0 0.0
    %161 = vmatprep.subr.mxu0 0.0
    %162 = vmatpush1.msra.mxu0 0.0
    %163 = vmatprep.subr.mxu0 0.0
    %164 = vmatpush1.msra.mxu0 0.0
    %165 = vmatprep.subr.mxu0 0.0
    %166 = vmatpush1.msra.mxu0 0.0
    %167 = vmatprep.subr.mxu0 0.0
    %168 = vmatpush1.msra.mxu0 0.0
    %169 = vmatprep.subr.mxu0 0.0
    %170 = vmatpush1.msra.mxu0 0.0
    %171 = vmatprep.subr.mxu0 0.0
    %172 = vmatpush1.msra.mxu0 0.0
    %173 = vmatprep.subr.mxu0 0.0
    %174 = vmatpush1.msra.mxu0 %v141
    %175 = vmatprep.subr.mxu0 0.0
    %176 = vmatpush2.msra.mxu0 0.0
    %177 = vmatprep.subr.mxu0 0.0
    %178 = vmatpush2.msra.mxu0 0.0
    %179 = vmatprep.subr.mxu0 0.0
    %180 = vmatpush2.msra.mxu0 0.0
    %181 = vmatprep.subr.mxu0 0.0
    %182 = vmatpush2.msra.mxu0 0.0
    %183 = vmatprep.subr.mxu0 0.0
    %184 = vmatpush2.msra.mxu0 0.0
    %185 = vmatprep.subr.mxu0 0.0
    %186 = vmatpush2.msra.mxu0 0.0
    %187 = vmatprep.subr.mxu0 0.0
    %188 = vmatpush2.msra.mxu0 0.0
    %189 = vmatprep.subr.mxu0 0.0
    %190 = vmatpush2.msra.mxu0 0.0
    %191 = vmatprep.subr.mxu0 0.0
    %192 = vmatpush2.msra.mxu0 0.0
    %193 = vmatprep.subr.mxu0 0.0
    %194 = vmatpush2.msra.mxu0 0.0
    %195 = vmatprep.subr.mxu0 0.0
    %196 = vmatpush2.msra.mxu0 0.0
    %197 = vmatprep.subr.mxu0 0.0
    %198 = vmatpush2.msra.mxu0 0.0
    %199 = vmatprep.subr.mxu0 0.0
    %200 = vmatpush2.msra.mxu0 0.0
    %201 = vmatprep.subr.mxu0 0.0
    %202 = vmatpush2.msra.mxu0 0.0
    %203 = vmatprep.subr.mxu0 0.0
    %204 = vmatpush2.msra.mxu0 0.0
    %205 = vmatprep.subr.mxu0 0.0
    %206 = vmatpush2.msra.mxu0 0.0
    %207 = vmatprep.mubr.f32.mxu0 0.0
    %208 = vmatmul.mubr.f32.gmra.mxu0 %v116
    %v209 = vpop.f32.mrf.mxu0
    %v210 = vadd.f32 %v113, %v209
    %v211 = vpop.f32.mrf.mxu0
    %212 = vmatprep.mubr.f32.mxu0 0.0
    %213 = vmatmul.mubr.f32.gmra.mxu0 %v119
    %v214 = vpop.f32.mrf.mxu0
    %v215 = vadd.f32 %v113, %v214
    %v216 = vpop.f32.mrf.mxu0
    %217 = vmatprep.mubr.f32.mxu0 0.0
    %218 = vmatmul.mubr.f32.gmra.mxu0 %v122
    %v219 = vpop.f32.mrf.mxu0
    %v220 = vadd.f32 %v113, %v219
    %v221 = vpop.f32.mrf.mxu0
    %222 = vmatprep.mubr.f32.mxu0 0.0
    %223 = vmatmul.mubr.f32.gmra.mxu0 %v125
    %v224 = vpop.f32.mrf.mxu0
    %v225 = vadd.f32 %v113, %v224
    %v226 = vpop.f32.mrf.mxu0
    %227 = vmatprep.mubr.f32.mxu0 0.0
    %228 = vmatmul.mubr.f32.gmra.mxu0 %v128
    %v229 = vpop.f32.mrf.mxu0
    %v230 = vadd.f32 %v113, %v229
    %v231 = vpop.f32.mrf.mxu0
    %232 = vmatprep.mubr.f32.mxu0 0.0
    %233 = vmatmul.mubr.f32.gmra.mxu0 %v131
    %v234 = vpop.f32.mrf.mxu0
    %v235 = vadd.f32 %v113, %v234
    %v236 = vpop.f32.mrf.mxu0
    %237 = vmatprep.mubr.f32.mxu0 0.0
    %238 = vmatmul.mubr.f32.gmra.mxu0 %v134
    %v239 = vpop.f32.mrf.mxu0
    %v240 = vadd.f32 %v113, %v239
    %v241 = vpop.f32.mrf.mxu0
    %242 = vmatprep.mubr.f32.mxu0 0.0
    %243 = vmatmul.mubr.f32.gmra.mxu0 %v137
    %v244 = vpop.f32.mrf.mxu0
    %v245 = vadd.f32 %v113, %v244
    %v246 = vpop.f32.mrf.mxu0
    %247 = vdwg.mxu0
    %vm248 = vcmask 261120
    %v250 = vsel %vm248, 0.0, 0
    %252 = vmatprep.subr.mxu0 0.0
    %253 = vmatpush1.msra.mxu0 0.0
    %254 = vmatprep.subr.mxu0 0.0
    %255 = vmatpush1.msra.mxu0 0.0
    %256 = vmatprep.subr.mxu0 0.0
    %257 = vmatpush1.msra.mxu0 0.0
    %258 = vmatprep.subr.mxu0 0.0
    %259 = vmatpush1.msra.mxu0 0.0
    %260 = vmatprep.subr.mxu0 0.0
    %261 = vmatpush1.msra.mxu0 0.0
    %262 = vmatprep.subr.mxu0 0.0
    %263 = vmatpush1.msra.mxu0 0.0
    %264 = vmatprep.subr.mxu0 0.0
    %265 = vmatpush1.msra.mxu0 0.0
    %266 = vmatprep.subr.mxu0 0.0
    %267 = vmatpush1.msra.mxu0 0.0
    %268 = vmatprep.subr.mxu0 0.0
    %269 = vmatpush1.msra.mxu0 0.0
    %270 = vmatprep.subr.mxu0 0.0
    %271 = vmatpush1.msra.mxu0 0.0
    %272 = vmatprep.subr.mxu0 0.0
    %273 = vmatpush1.msra.mxu0 0.0
    %274 = vmatprep.subr.mxu0 0.0
    %275 = vmatpush1.msra.mxu0 0.0
    %276 = vmatprep.subr.mxu0 0.0
    %277 = vmatpush1.msra.mxu0 %v48
    %278 = vmatprep.subr.mxu0 0.0
    %279 = vmatpush1.msra.mxu0 %v47
    %280 = vmatprep.subr.mxu0 0.0
    %281 = vmatpush1.msra.mxu0 %v46
    %282 = vmatprep.subr.mxu0 0.0
    %283 = vmatpush1.msra.mxu0 %v45
    %284 = vmatprep.subr.mxu0 0.0
    %285 = vmatpush2.msra.mxu0 0.0
    %286 = vmatprep.subr.mxu0 0.0
    %287 = vmatpush2.msra.mxu0 0.0
    %288 = vmatprep.subr.mxu0 0.0
    %289 = vmatpush2.msra.mxu0 0.0
    %290 = vmatprep.subr.mxu0 0.0
    %291 = vmatpush2.msra.mxu0 0.0
    %292 = vmatprep.subr.mxu0 0.0
    %293 = vmatpush2.msra.mxu0 0.0
    %294 = vmatprep.subr.mxu0 0.0
    %295 = vmatpush2.msra.mxu0 0.0
    %296 = vmatprep.subr.mxu0 0.0
    %297 = vmatpush2.msra.mxu0 0.0
    %298 = vmatprep.subr.mxu0 0.0
    %299 = vmatpush2.msra.mxu0 0.0
    %300 = vmatprep.subr.mxu0 0.0
    %301 = vmatpush2.msra.mxu0 0.0
    %302 = vmatprep.subr.mxu0 0.0
    %303 = vmatpush2.msra.mxu0 0.0
    %304 = vmatprep.subr.mxu0 0.0
    %305 = vmatpush2.msra.mxu0 0.0
    %306 = vmatprep.subr.mxu0 0.0
    %307 = vmatpush2.msra.mxu0 0.0
    %308 = vmatprep.subr.mxu0 0.0
    %309 = vmatpush2.msra.mxu0 0.0
    %310 = vmatprep.subr.mxu0 0.0
    %311 = vmatpush2.msra.mxu0 0.0
    %312 = vmatprep.subr.mxu0 0.0
    %313 = vmatpush2.msra.mxu0 0.0
    %314 = vmatprep.subr.mxu0 0.0
    %315 = vmatpush2.msra.mxu0 0.0
    %316 = vmatprep.mubr.f32.mxu0 0.0
    %317 = vmatmul.mubr.f32.gmra.mxu0 %v250
    %v318 = vpop.f32.mrf.mxu0
    %v319 = vadd.f32 0.0, %v318
    %v320 = vpop.f32.mrf.mxu0
    %321 = vdwg.mxu0
    %v322 = vadd.f32 %v210, %v319
    %v323 = vxor.u32 %v322, 2147483648
    %v324 = vmul.f32 %v323, 1.442695
    %v325 = vpow.pop %v324
    %v326 = vadd.f32 %v325, 1.0
    %v327 = vrcp.pop %v326
    %v328 = vmul.f32 1.0, %v327
    %v329 = vtanh.pop %v322
    %v330 = vmul.f32 %v328, 0.0
    %332 = vrot.lane.b32.xlu0 %v329, 64
    %v333 = vpop.permute.xlu0 %332
    %v335 = vmul.f32 %v328, %v333
    %337 = vrot.lane.b32.xlu0 %v335, 32
    %v338 = vpop.permute.xlu0 %337
    %v340 = vadd.f32 %v330, %v338
    %v341 = vtanh.pop %v340
    %343 = vrot.lane.b32.xlu0 %v341, 64
    %v344 = vpop.permute.xlu0 %343
    %v346 = vmul.f32 %v328, %v344
    %348 = vrot.lane.b32.xlu0 %v346, 32
    %v349 = vpop.permute.xlu0 %348
    %v350 = vsel %vm248, %v349, 0
    %352 = vmatprep.subr.mxu0 0.0
    %353 = vmatpush1.msra.mxu0 0.0
    %354 = vmatprep.subr.mxu0 0.0
    %355 = vmatpush1.msra.mxu0 0.0
    %356 = vmatprep.subr.mxu0 0.0
    %357 = vmatpush1.msra.mxu0 0.0
    %358 = vmatprep.subr.mxu0 0.0
    %359 = vmatpush1.msra.mxu0 0.0
    %360 = vmatprep.subr.mxu0 0.0
    %361 = vmatpush1.msra.mxu0 0.0
    %362 = vmatprep.subr.mxu0 0.0
    %363 = vmatpush1.msra.mxu0 0.0
    %364 = vmatprep.subr.mxu0 0.0
    %365 = vmatpush1.msra.mxu0 0.0
    %366 = vmatprep.subr.mxu0 0.0
    %367 = vmatpush1.msra.mxu0 0.0
    %368 = vmatprep.subr.mxu0 0.0
    %369 = vmatpush1.msra.mxu0 0.0
    %370 = vmatprep.subr.mxu0 0.0
    %371 = vmatpush1.msra.mxu0 0.0
    %372 = vmatprep.subr.mxu0 0.0
    %373 = vmatpush1.msra.mxu0 0.0
    %374 = vmatprep.subr.mxu0 0.0
    %375 = vmatpush1.msra.mxu0 0.0
    %376 = vmatprep.subr.mxu0 0.0
    %377 = vmatpush1.msra.mxu0 %v48
    %378 = vmatprep.subr.mxu0 0.0
    %379 = vmatpush1.msra.mxu0 %v47
    %380 = vmatprep.subr.mxu0 0.0
    %381 = vmatpush1.msra.mxu0 %v46
    %382 = vmatprep.subr.mxu0 0.0
    %383 = vmatpush1.msra.mxu0 %v45
    %384 = vmatprep.subr.mxu0 0.0
    %385 = vmatpush2.msra.mxu0 0.0
    %386 = vmatprep.subr.mxu0 0.0
    %387 = vmatpush2.msra.mxu0 0.0
    %388 = vmatprep.subr.mxu0 0.0
    %389 = vmatpush2.msra.mxu0 0.0
    %390 = vmatprep.subr.mxu0 0.0
    %391 = vmatpush2.msra.mxu0 0.0
    %392 = vmatprep.subr.mxu0 0.0
    %393 = vmatpush2.msra.mxu0 0.0
    %394 = vmatprep.subr.mxu0 0.0
    %395 = vmatpush2.msra.mxu0 0.0
    %396 = vmatprep.subr.mxu0 0.0
    %397 = vmatpush2.msra.mxu0 0.0
    %398 = vmatprep.subr.mxu0 0.0
    %399 = vmatpush2.msra.mxu0 0.0
    %400 = vmatprep.subr.mxu0 0.0
    %401 = vmatpush2.msra.mxu0 0.0
    %402 = vmatprep.subr.mxu0 0.0
    %403 = vmatpush2.msra.mxu0 0.0
    %404 = vmatprep.subr.mxu0 0.0
    %405 = vmatpush2.msra.mxu0 0.0
    %406 = vmatprep.subr.mxu0 0.0
    %407 = vmatpush2.msra.mxu0 0.0
    %408 = vmatprep.subr.mxu0 0.0
    %409 = vmatpush2.msra.mxu0 0.0
    %410 = vmatprep.subr.mxu0 0.0
    %411 = vmatpush2.msra.mxu0 0.0
    %412 = vmatprep.subr.mxu0 0.0
    %413 = vmatpush2.msra.mxu0 0.0
    %414 = vmatprep.subr.mxu0 0.0
    %415 = vmatpush2.msra.mxu0 0.0
    %416 = vmatprep.mubr.f32.mxu0 0.0
    %417 = vmatmul.mubr.f32.gmra.mxu0 %v350
    %v418 = vpop.f32.mrf.mxu0
    %v419 = vadd.f32 0.0, %v418
    %v420 = vpop.f32.mrf.mxu0
    %421 = vdwg.mxu0
    %v422 = vadd.f32 %v215, %v419
    %v423 = vxor.u32 %v422, 2147483648
    %v424 = vmul.f32 %v423, 1.442695
    %v425 = vpow.pop %v424
    %v426 = vadd.f32 %v425, 1.0
    %v427 = vrcp.pop %v426
    %v428 = vmul.f32 1.0, %v427
    %v429 = vtanh.pop %v422
    %v430 = vmul.f32 %v428, %v340
    %432 = vrot.lane.b32.xlu0 %v429, 64
    %v433 = vpop.permute.xlu0 %432
    %v435 = vmul.f32 %v428, %v433
    %437 = vrot.lane.b32.xlu0 %v435, 32
    %v438 = vpop.permute.xlu0 %437
    %v440 = vadd.f32 %v430, %v438
    %v441 = vtanh.pop %v440
    %443 = vrot.lane.b32.xlu0 %v441, 64
    %v444 = vpop.permute.xlu0 %443
    %v446 = vmul.f32 %v428, %v444
    %448 = vrot.lane.b32.xlu0 %v446, 32
    %v449 = vpop.permute.xlu0 %448
    %v450 = vsel %vm248, %v449, 0
    %452 = vmatprep.subr.mxu0 0.0
    %453 = vmatpush1.msra.mxu0 0.0
    %454 = vmatprep.subr.mxu0 0.0
    %455 = vmatpush1.msra.mxu0 0.0
    %456 = vmatprep.subr.mxu0 0.0
    %457 = vmatpush1.msra.mxu0 0.0
    %458 = vmatprep.subr.mxu0 0.0
    %459 = vmatpush1.msra.mxu0 0.0
    %460 = vmatprep.subr.mxu0 0.0
    %461 = vmatpush1.msra.mxu0 0.0
    %462 = vmatprep.subr.mxu0 0.0
    %463 = vmatpush1.msra.mxu0 0.0
    %464 = vmatprep.subr.mxu0 0.0
    %465 = vmatpush1.msra.mxu0 0.0
    %466 = vmatprep.subr.mxu0 0.0
    %467 = vmatpush1.msra.mxu0 0.0
    %468 = vmatprep.subr.mxu0 0.0
    %469 = vmatpush1.msra.mxu0 0.0
    %470 = vmatprep.subr.mxu0 0.0
    %471 = vmatpush1.msra.mxu0 0.0
    %472 = vmatprep.subr.mxu0 0.0
    %473 = vmatpush1.msra.mxu0 0.0
    %474 = vmatprep.subr.mxu0 0.0
    %475 = vmatpush1.msra.mxu0 0.0
    %476 = vmatprep.subr.mxu0 0.0
    %477 = vmatpush1.msra.mxu0 %v48
    %478 = vmatprep.subr.mxu0 0.0
    %479 = vmatpush1.msra.mxu0 %v47
    %480 = vmatprep.subr.mxu0 0.0
    %481 = vmatpush1.msra.mxu0 %v46
    %482 = vmatprep.subr.mxu0 0.0
    %483 = vmatpush1.msra.mxu0 %v45
    %484 = vmatprep.subr.mxu0 0.0
    %485 = vmatpush2.msra.mxu0 0.0
    %486 = vmatprep.subr.mxu0 0.0
    %487 = vmatpush2.msra.mxu0 0.0
    %488 = vmatprep.subr.mxu0 0.0
    %489 = vmatpush2.msra.mxu0 0.0
    %490 = vmatprep.subr.mxu0 0.0
    %491 = vmatpush2.msra.mxu0 0.0
    %492 = vmatprep.subr.mxu0 0.0
    %493 = vmatpush2.msra.mxu0 0.0
    %494 = vmatprep.subr.mxu0 0.0
    %495 = vmatpush2.msra.mxu0 0.0
    %496 = vmatprep.subr.mxu0 0.0
    %497 = vmatpush2.msra.mxu0 0.0
    %498 = vmatprep.subr.mxu0 0.0
    %499 = vmatpush2.msra.mxu0 0.0
    %500 = vmatprep.subr.mxu0 0.0
    %501 = vmatpush2.msra.mxu0 0.0
    %502 = vmatprep.subr.mxu0 0.0
    %503 = vmatpush2.msra.mxu0 0.0
    %504 = vmatprep.subr.mxu0 0.0
    %505 = vmatpush2.msra.mxu0 0.0
    %506 = vmatprep.subr.mxu0 0.0
    %507 = vmatpush2.msra.mxu0 0.0
    %508 = vmatprep.subr.mxu0 0.0
    %509 = vmatpush2.msra.mxu0 0.0
    %510 = vmatprep.subr.mxu0 0.0
    %511 = vmatpush2.msra.mxu0 0.0
    %512 = vmatprep.subr.mxu0 0.0
    %513 = vmatpush2.msra.mxu0 0.0
    %514 = vmatprep.subr.mxu0 0.0
    %515 = vmatpush2.msra.mxu0 0.0
    %516 = vmatprep.mubr.f32.mxu0 0.0
    %517 = vmatmul.mubr.f32.gmra.mxu0 %v450
    %v518 = vpop.f32.mrf.mxu0
    %v519 = vadd.f32 0.0, %v518
    %v520 = vpop.f32.mrf.mxu0
    %521 = vdwg.mxu0
    %v522 = vadd.f32 %v220, %v519
    %v523 = vxor.u32 %v522, 2147483648
    %v524 = vmul.f32 %v523, 1.442695
    %v525 = vpow.pop %v524
    %v526 = vadd.f32 %v525, 1.0
    %v527 = vrcp.pop %v526
    %v528 = vmul.f32 1.0, %v527
    %v529 = vtanh.pop %v522
    %v530 = vmul.f32 %v528, %v440
    %532 = vrot.lane.b32.xlu0 %v529, 64
    %v533 = vpop.permute.xlu0 %532
    %v535 = vmul.f32 %v528, %v533
    %537 = vrot.lane.b32.xlu0 %v535, 32
    %v538 = vpop.permute.xlu0 %537
    %v540 = vadd.f32 %v530, %v538
    %v541 = vtanh.pop %v540
    %543 = vrot.lane.b32.xlu0 %v541, 64
    %v544 = vpop.permute.xlu0 %543
    %v546 = vmul.f32 %v528, %v544
    %548 = vrot.lane.b32.xlu0 %v546, 32
    %v549 = vpop.permute.xlu0 %548
    %v550 = vsel %vm248, %v549, 0
    %552 = vmatprep.subr.mxu0 0.0
    %553 = vmatpush1.msra.mxu0 0.0
    %554 = vmatprep.subr.mxu0 0.0
    %555 = vmatpush1.msra.mxu0 0.0
    %556 = vmatprep.subr.mxu0 0.0
    %557 = vmatpush1.msra.mxu0 0.0
    %558 = vmatprep.subr.mxu0 0.0
    %559 = vmatpush1.msra.mxu0 0.0
    %560 = vmatprep.subr.mxu0 0.0
    %561 = vmatpush1.msra.mxu0 0.0
    %562 = vmatprep.subr.mxu0 0.0
    %563 = vmatpush1.msra.mxu0 0.0
    %564 = vmatprep.subr.mxu0 0.0
    %565 = vmatpush1.msra.mxu0 0.0
    %566 = vmatprep.subr.mxu0 0.0
    %567 = vmatpush1.msra.mxu0 0.0
    %568 = vmatprep.subr.mxu0 0.0
    %569 = vmatpush1.msra.mxu0 0.0
    %570 = vmatprep.subr.mxu0 0.0
    %571 = vmatpush1.msra.mxu0 0.0
    %572 = vmatprep.subr.mxu0 0.0
    %573 = vmatpush1.msra.mxu0 0.0
    %574 = vmatprep.subr.mxu0 0.0
    %575 = vmatpush1.msra.mxu0 0.0
    %576 = vmatprep.subr.mxu0 0.0
    %577 = vmatpush1.msra.mxu0 %v48
    %578 = vmatprep.subr.mxu0 0.0
    %579 = vmatpush1.msra.mxu0 %v47
    %580 = vmatprep.subr.mxu0 0.0
    %581 = vmatpush1.msra.mxu0 %v46
    %582 = vmatprep.subr.mxu0 0.0
    %583 = vmatpush1.msra.mxu0 %v45
    %584 = vmatprep.subr.mxu0 0.0
    %585 = vmatpush2.msra.mxu0 0.0
    %586 = vmatprep.subr.mxu0 0.0
    %587 = vmatpush2.msra.mxu0 0.0
    %588 = vmatprep.subr.mxu0 0.0
    %589 = vmatpush2.msra.mxu0 0.0
    %590 = vmatprep.subr.mxu0 0.0
    %591 = vmatpush2.msra.mxu0 0.0
    %592 = vmatprep.subr.mxu0 0.0
    %593 = vmatpush2.msra.mxu0 0.0
    %594 = vmatprep.subr.mxu0 0.0
    %595 = vmatpush2.msra.mxu0 0.0
    %596 = vmatprep.subr.mxu0 0.0
    %597 = vmatpush2.msra.mxu0 0.0
    %598 = vmatprep.subr.mxu0 0.0
    %599 = vmatpush2.msra.mxu0 0.0
    %600 = vmatprep.subr.mxu0 0.0
    %601 = vmatpush2.msra.mxu0 0.0
    %602 = vmatprep.subr.mxu0 0.0
    %603 = vmatpush2.msra.mxu0 0.0
    %604 = vmatprep.subr.mxu0 0.0
    %605 = vmatpush2.msra.mxu0 0.0
    %606 = vmatprep.subr.mxu0 0.0
    %607 = vmatpush2.msra.mxu0 0.0
    %608 = vmatprep.subr.mxu0 0.0
    %609 = vmatpush2.msra.mxu0 0.0
    %610 = vmatprep.subr.mxu0 0.0
    %611 = vmatpush2.msra.mxu0 0.0
    %612 = vmatprep.subr.mxu0 0.0
    %613 = vmatpush2.msra.mxu0 0.0
    %614 = vmatprep.subr.mxu0 0.0
    %615 = vmatpush2.msra.mxu0 0.0
    %616 = vmatprep.mubr.f32.mxu0 0.0
    %617 = vmatmul.mubr.f32.gmra.mxu0 %v550
    %v618 = vpop.f32.mrf.mxu0
    %v619 = vadd.f32 0.0, %v618
    %v620 = vpop.f32.mrf.mxu0
    %621 = vdwg.mxu0
    %v622 = vadd.f32 %v225, %v619
    %v623 = vxor.u32 %v622, 2147483648
    %v624 = vmul.f32 %v623, 1.442695
    %v625 = vpow.pop %v624
    %v626 = vadd.f32 %v625, 1.0
    %v627 = vrcp.pop %v626
    %v628 = vmul.f32 1.0, %v627
    %v629 = vtanh.pop %v622
    %v630 = vmul.f32 %v628, %v540
    %632 = vrot.lane.b32.xlu0 %v629, 64
    %v633 = vpop.permute.xlu0 %632
    %v635 = vmul.f32 %v628, %v633
    %637 = vrot.lane.b32.xlu0 %v635, 32
    %v638 = vpop.permute.xlu0 %637
    %v640 = vadd.f32 %v630, %v638
    %v641 = vtanh.pop %v640
    %643 = vrot.lane.b32.xlu0 %v641, 64
    %v644 = vpop.permute.xlu0 %643
    %v646 = vmul.f32 %v628, %v644
    %648 = vrot.lane.b32.xlu0 %v646, 32
    %v649 = vpop.permute.xlu0 %648
    %v650 = vsel %vm248, %v649, 0
    %652 = vmatprep.subr.mxu0 0.0
    %653 = vmatpush1.msra.mxu0 0.0
    %654 = vmatprep.subr.mxu0 0.0
    %655 = vmatpush1.msra.mxu0 0.0
    %656 = vmatprep.subr.mxu0 0.0
    %657 = vmatpush1.msra.mxu0 0.0
    %658 = vmatprep.subr.mxu0 0.0
    %659 = vmatpush1.msra.mxu0 0.0
    %660 = vmatprep.subr.mxu0 0.0
    %661 = vmatpush1.msra.mxu0 0.0
    %662 = vmatprep.subr.mxu0 0.0
    %663 = vmatpush1.msra.mxu0 0.0
    %664 = vmatprep.subr.mxu0 0.0
    %665 = vmatpush1.msra.mxu0 0.0
    %666 = vmatprep.subr.mxu0 0.0
    %667 = vmatpush1.msra.mxu0 0.0
    %668 = vmatprep.subr.mxu0 0.0
    %669 = vmatpush1.msra.mxu0 0.0
    %670 = vmatprep.subr.mxu0 0.0
    %671 = vmatpush1.msra.mxu0 0.0
    %672 = vmatprep.subr.mxu0 0.0
    %673 = vmatpush1.msra.mxu0 0.0
    %674 = vmatprep.subr.mxu0 0.0
    %675 = vmatpush1.msra.mxu0 0.0
    %676 = vmatprep.subr.mxu0 0.0
    %677 = vmatpush1.msra.mxu0 %v48
    %678 = vmatprep.subr.mxu0 0.0
    %679 = vmatpush1.msra.mxu0 %v47
    %680 = vmatprep.subr.mxu0 0.0
    %681 = vmatpush1.msra.mxu0 %v46
    %682 = vmatprep.subr.mxu0 0.0
    %683 = vmatpush1.msra.mxu0 %v45
    %684 = vmatprep.subr.mxu0 0.0
    %685 = vmatpush2.msra.mxu0 0.0
    %686 = vmatprep.subr.mxu0 0.0
    %687 = vmatpush2.msra.mxu0 0.0
    %688 = vmatprep.subr.mxu0 0.0
    %689 = vmatpush2.msra.mxu0 0.0
    %690 = vmatprep.subr.mxu0 0.0
    %691 = vmatpush2.msra.mxu0 0.0
    %692 = vmatprep.subr.mxu0 0.0
    %693 = vmatpush2.msra.mxu0 0.0
    %694 = vmatprep.subr.mxu0 0.0
    %695 = vmatpush2.msra.mxu0 0.0
    %696 = vmatprep.subr.mxu0 0.0
    %697 = vmatpush2.msra.mxu0 0.0
    %698 = vmatprep.subr.mxu0 0.0
    %699 = vmatpush2.msra.mxu0 0.0
    %700 = vmatprep.subr.mxu0 0.0
    %701 = vmatpush2.msra.mxu0 0.0
    %702 = vmatprep.subr.mxu0 0.0
    %703 = vmatpush2.msra.mxu0 0.0
    %704 = vmatprep.subr.mxu0 0.0
    %705 = vmatpush2.msra.mxu0 0.0
    %706 = vmatprep.subr.mxu0 0.0
    %707 = vmatpush2.msra.mxu0 0.0
    %708 = vmatprep.subr.mxu0 0.0
    %709 = vmatpush2.msra.mxu0 0.0
    %710 = vmatprep.subr.mxu0 0.0
    %711 = vmatpush2.msra.mxu0 0.0
    %712 = vmatprep.subr.mxu0 0.0
    %713 = vmatpush2.msra.mxu0 0.0
    %714 = vmatprep.subr.mxu0 0.0
    %715 = vmatpush2.msra.mxu0 0.0
    %716 = vmatprep.mubr.f32.mxu0 0.0
    %717 = vmatmul.mubr.f32.gmra.mxu0 %v650
    %v718 = vpop.f32.mrf.mxu0
    %v719 = vadd.f32 0.0, %v718
    %v720 = vpop.f32.mrf.mxu0
    %721 = vdwg.mxu0
    %v722 = vadd.f32 %v230, %v719
    %v723 = vxor.u32 %v722, 2147483648
    %v724 = vmul.f32 %v723, 1.442695
    %v725 = vpow.pop %v724
    %v726 = vadd.f32 %v725, 1.0
    %v727 = vrcp.pop %v726
    %v728 = vmul.f32 1.0, %v727
    %v729 = vtanh.pop %v722
    %v730 = vmul.f32 %v728, %v640
    %732 = vrot.lane.b32.xlu0 %v729, 64
    %v733 = vpop.permute.xlu0 %732
    %v735 = vmul.f32 %v728, %v733
    %737 = vrot.lane.b32.xlu0 %v735, 32
    %v738 = vpop.permute.xlu0 %737
    %v740 = vadd.f32 %v730, %v738
    %v741 = vtanh.pop %v740
    %743 = vrot.lane.b32.xlu0 %v741, 64
    %v744 = vpop.permute.xlu0 %743
    %v746 = vmul.f32 %v728, %v744
    %748 = vrot.lane.b32.xlu0 %v746, 32
    %v749 = vpop.permute.xlu0 %748
    %v750 = vsel %vm248, %v749, 0
    %752 = vmatprep.subr.mxu0 0.0
    %753 = vmatpush1.msra.mxu0 0.0
    %754 = vmatprep.subr.mxu0 0.0
    %755 = vmatpush1.msra.mxu0 0.0
    %756 = vmatprep.subr.mxu0 0.0
    %757 = vmatpush1.msra.mxu0 0.0
    %758 = vmatprep.subr.mxu0 0.0
    %759 = vmatpush1.msra.mxu0 0.0
    %760 = vmatprep.subr.mxu0 0.0
    %761 = vmatpush1.msra.mxu0 0.0
    %762 = vmatprep.subr.mxu0 0.0
    %763 = vmatpush1.msra.mxu0 0.0
    %764 = vmatprep.subr.mxu0 0.0
    %765 = vmatpush1.msra.mxu0 0.0
    %766 = vmatprep.subr.mxu0 0.0
    %767 = vmatpush1.msra.mxu0 0.0
    %768 = vmatprep.subr.mxu0 0.0
    %769 = vmatpush1.msra.mxu0 0.0
    %770 = vmatprep.subr.mxu0 0.0
    %771 = vmatpush1.msra.mxu0 0.0
    %772 = vmatprep.subr.mxu0 0.0
    %773 = vmatpush1.msra.mxu0 0.0
    %774 = vmatprep.subr.mxu0 0.0
    %775 = vmatpush1.msra.mxu0 0.0
    %776 = vmatprep.subr.mxu0 0.0
    %777 = vmatpush1.msra.mxu0 %v48
    %778 = vmatprep.subr.mxu0 0.0
    %779 = vmatpush1.msra.mxu0 %v47
    %780 = vmatprep.subr.mxu0 0.0
    %781 = vmatpush1.msra.mxu0 %v46
    %782 = vmatprep.subr.mxu0 0.0
    %783 = vmatpush1.msra.mxu0 %v45
    %784 = vmatprep.subr.mxu0 0.0
    %785 = vmatpush2.msra.mxu0 0.0
    %786 = vmatprep.subr.mxu0 0.0
    %787 = vmatpush2.msra.mxu0 0.0
    %788 = vmatprep.subr.mxu0 0.0
    %789 = vmatpush2.msra.mxu0 0.0
    %790 = vmatprep.subr.mxu0 0.0
    %791 = vmatpush2.msra.mxu0 0.0
    %792 = vmatprep.subr.mxu0 0.0
    %793 = vmatpush2.msra.mxu0 0.0
    %794 = vmatprep.subr.mxu0 0.0
    %795 = vmatpush2.msra.mxu0 0.0
    %796 = vmatprep.subr.mxu0 0.0
    %797 = vmatpush2.msra.mxu0 0.0
    %798 = vmatprep.subr.mxu0 0.0
    %799 = vmatpush2.msra.mxu0 0.0
    %800 = vmatprep.subr.mxu0 0.0
    %801 = vmatpush2.msra.mxu0 0.0
    %802 = vmatprep.subr.mxu0 0.0
    %803 = vmatpush2.msra.mxu0 0.0
    %804 = vmatprep.subr.mxu0 0.0
    %805 = vmatpush2.msra.mxu0 0.0
    %806 = vmatprep.subr.mxu0 0.0
    %807 = vmatpush2.msra.mxu0 0.0
    %808 = vmatprep.subr.mxu0 0.0
    %809 = vmatpush2.msra.mxu0 0.0
    %810 = vmatprep.subr.mxu0 0.0
    %811 = vmatpush2.msra.mxu0 0.0
    %812 = vmatprep.subr.mxu0 0.0
    %813 = vmatpush2.msra.mxu0 0.0
    %814 = vmatprep.subr.mxu0 0.0
    %815 = vmatpush2.msra.mxu0 0.0
    %816 = vmatprep.mubr.f32.mxu0 0.0
    %817 = vmatmul.mubr.f32.gmra.mxu0 %v750
    %v818 = vpop.f32.mrf.mxu0
    %v819 = vadd.f32 0.0, %v818
    %v820 = vpop.f32.mrf.mxu0
    %821 = vdwg.mxu0
    %v822 = vadd.f32 %v235, %v819
    %v823 = vxor.u32 %v822, 2147483648
    %v824 = vmul.f32 %v823, 1.442695
    %v825 = vpow.pop %v824
    %v826 = vadd.f32 %v825, 1.0
    %v827 = vrcp.pop %v826
    %v828 = vmul.f32 1.0, %v827
    %v829 = vtanh.pop %v822
    %v830 = vmul.f32 %v828, %v740
    %832 = vrot.lane.b32.xlu0 %v829, 64
    %v833 = vpop.permute.xlu0 %832
    %v835 = vmul.f32 %v828, %v833
    %837 = vrot.lane.b32.xlu0 %v835, 32
    %v838 = vpop.permute.xlu0 %837
    %v840 = vadd.f32 %v830, %v838
    %v841 = vtanh.pop %v840
    %843 = vrot.lane.b32.xlu0 %v841, 64
    %v844 = vpop.permute.xlu0 %843
    %v846 = vmul.f32 %v828, %v844
    %848 = vrot.lane.b32.xlu0 %v846, 32
    %v849 = vpop.permute.xlu0 %848
    %v850 = vsel %vm248, %v849, 0
    %852 = vmatprep.subr.mxu0 0.0
    %853 = vmatpush1.msra.mxu0 0.0
    %854 = vmatprep.subr.mxu0 0.0
    %855 = vmatpush1.msra.mxu0 0.0
    %856 = vmatprep.subr.mxu0 0.0
    %857 = vmatpush1.msra.mxu0 0.0
    %858 = vmatprep.subr.mxu0 0.0
    %859 = vmatpush1.msra.mxu0 0.0
    %860 = vmatprep.subr.mxu0 0.0
    %861 = vmatpush1.msra.mxu0 0.0
    %862 = vmatprep.subr.mxu0 0.0
    %863 = vmatpush1.msra.mxu0 0.0
    %864 = vmatprep.subr.mxu0 0.0
    %865 = vmatpush1.msra.mxu0 0.0
    %866 = vmatprep.subr.mxu0 0.0
    %867 = vmatpush1.msra.mxu0 0.0
    %868 = vmatprep.subr.mxu0 0.0
    %869 = vmatpush1.msra.mxu0 0.0
    %870 = vmatprep.subr.mxu0 0.0
    %871 = vmatpush1.msra.mxu0 0.0
    %872 = vmatprep.subr.mxu0 0.0
    %873 = vmatpush1.msra.mxu0 0.0
    %874 = vmatprep.subr.mxu0 0.0
    %875 = vmatpush1.msra.mxu0 0.0
    %876 = vmatprep.subr.mxu0 0.0
    %877 = vmatpush1.msra.mxu0 %v48
    %878 = vmatprep.subr.mxu0 0.0
    %879 = vmatpush1.msra.mxu0 %v47
    %880 = vmatprep.subr.mxu0 0.0
    %881 = vmatpush1.msra.mxu0 %v46
    %882 = vmatprep.subr.mxu0 0.0
    %883 = vmatpush1.msra.mxu0 %v45
    %884 = vmatprep.subr.mxu0 0.0
    %885 = vmatpush2.msra.mxu0 0.0
    %886 = vmatprep.subr.mxu0 0.0
    %887 = vmatpush2.msra.mxu0 0.0
    %888 = vmatprep.subr.mxu0 0.0
    %889 = vmatpush2.msra.mxu0 0.0
    %890 = vmatprep.subr.mxu0 0.0
    %891 = vmatpush2.msra.mxu0 0.0
    %892 = vmatprep.subr.mxu0 0.0
    %893 = vmatpush2.msra.mxu0 0.0
    %894 = vmatprep.subr.mxu0 0.0
    %895 = vmatpush2.msra.mxu0 0.0
    %896 = vmatprep.subr.mxu0 0.0
    %897 = vmatpush2.msra.mxu0 0.0
    %898 = vmatprep.subr.mxu0 0.0
    %899 = vmatpush2.msra.mxu0 0.0
    %900 = vmatprep.subr.mxu0 0.0
    %901 = vmatpush2.msra.mxu0 0.0
    %902 = vmatprep.subr.mxu0 0.0
    %903 = vmatpush2.msra.mxu0 0.0
    %904 = vmatprep.subr.mxu0 0.0
    %905 = vmatpush2.msra.mxu0 0.0
    %906 = vmatprep.subr.mxu0 0.0
    %907 = vmatpush2.msra.mxu0 0.0
    %908 = vmatprep.subr.mxu0 0.0
    %909 = vmatpush2.msra.mxu0 0.0
    %910 = vmatprep.subr.mxu0 0.0
    %911 = vmatpush2.msra.mxu0 0.0
    %912 = vmatprep.subr.mxu0 0.0
    %913 = vmatpush2.msra.mxu0 0.0
    %914 = vmatprep.subr.mxu0 0.0
    %915 = vmatpush2.msra.mxu0 0.0
    %916 = vmatprep.mubr.f32.mxu0 0.0
    %917 = vmatmul.mubr.f32.gmra.mxu0 %v850
    %v918 = vpop.f32.mrf.mxu0
    %v919 = vadd.f32 0.0, %v918
    %v920 = vpop.f32.mrf.mxu0
    %921 = vdwg.mxu0
    %v922 = vadd.f32 %v240, %v919
    %v923 = vxor.u32 %v922, 2147483648
    %v924 = vmul.f32 %v923, 1.442695
    %v925 = vpow.pop %v924
    %v926 = vadd.f32 %v925, 1.0
    %v927 = vrcp.pop %v926
    %v928 = vmul.f32 1.0, %v927
    %v929 = vtanh.pop %v922
    %v930 = vmul.f32 %v928, %v840
    %932 = vrot.lane.b32.xlu0 %v929, 64
    %v933 = vpop.permute.xlu0 %932
    %v935 = vmul.f32 %v928, %v933
    %937 = vrot.lane.b32.xlu0 %v935, 32
    %v938 = vpop.permute.xlu0 %937
    %v940 = vadd.f32 %v930, %v938
    %v941 = vtanh.pop %v940
    %943 = vrot.lane.b32.xlu0 %v941, 64
    %v944 = vpop.permute.xlu0 %943
    %v946 = vmul.f32 %v928, %v944
    %948 = vrot.lane.b32.xlu0 %v946, 32
    %v949 = vpop.permute.xlu0 %948
    %v950 = vsel %vm248, %v949, 0
    %952 = vmatprep.subr.mxu0 0.0
    %953 = vmatpush1.msra.mxu0 0.0
    %954 = vmatprep.subr.mxu0 0.0
    %955 = vmatpush1.msra.mxu0 0.0
    %956 = vmatprep.subr.mxu0 0.0
    %957 = vmatpush1.msra.mxu0 0.0
    %958 = vmatprep.subr.mxu0 0.0
    %959 = vmatpush1.msra.mxu0 0.0
    %960 = vmatprep.subr.mxu0 0.0
    %961 = vmatpush1.msra.mxu0 0.0
    %962 = vmatprep.subr.mxu0 0.0
    %963 = vmatpush1.msra.mxu0 0.0
    %964 = vmatprep.subr.mxu0 0.0
    %965 = vmatpush1.msra.mxu0 0.0
    %966 = vmatprep.subr.mxu0 0.0
    %967 = vmatpush1.msra.mxu0 0.0
    %968 = vmatprep.subr.mxu0 0.0
    %969 = vmatpush1.msra.mxu0 0.0
    %970 = vmatprep.subr.mxu0 0.0
    %971 = vmatpush1.msra.mxu0 0.0
    %972 = vmatprep.subr.mxu0 0.0
    %973 = vmatpush1.msra.mxu0 0.0
    %974 = vmatprep.subr.mxu0 0.0
    %975 = vmatpush1.msra.mxu0 0.0
    %976 = vmatprep.subr.mxu0 0.0
    %977 = vmatpush1.msra.mxu0 %v48
    %978 = vmatprep.subr.mxu0 0.0
    %979 = vmatpush1.msra.mxu0 %v47
    %980 = vmatprep.subr.mxu0 0.0
    %981 = vmatpush1.msra.mxu0 %v46
    %982 = vmatprep.subr.mxu0 0.0
    %983 = vmatpush1.msra.mxu0 %v45
    %984 = vmatprep.subr.mxu0 0.0
    %985 = vmatpush2.msra.mxu0 0.0
    %986 = vmatprep.subr.mxu0 0.0
    %987 = vmatpush2.msra.mxu0 0.0
    %988 = vmatprep.subr.mxu0 0.0
    %989 = vmatpush2.msra.mxu0 0.0
    %990 = vmatprep.subr.mxu0 0.0
    %991 = vmatpush2.msra.mxu0 0.0
    %992 = vmatprep.subr.mxu0 0.0
    %993 = vmatpush2.msra.mxu0 0.0
    %994 = vmatprep.subr.mxu0 0.0
    %995 = vmatpush2.msra.mxu0 0.0
    %996 = vmatprep.subr.mxu0 0.0
    %997 = vmatpush2.msra.mxu0 0.0
    %998 = vmatprep.subr.mxu0 0.0
    %999 = vmatpush2.msra.mxu0 0.0
    %1000 = vmatprep.subr.mxu0 0.0
    %1001 = vmatpush2.msra.mxu0 0.0
    %1002 = vmatprep.subr.mxu0 0.0
    %1003 = vmatpush2.msra.mxu0 0.0
    %1004 = vmatprep.subr.mxu0 0.0
    %1005 = vmatpush2.msra.mxu0 0.0
    %1006 = vmatprep.subr.mxu0 0.0
    %1007 = vmatpush2.msra.mxu0 0.0
    %1008 = vmatprep.subr.mxu0 0.0
    %1009 = vmatpush2.msra.mxu0 0.0
    %1010 = vmatprep.subr.mxu0 0.0
    %1011 = vmatpush2.msra.mxu0 0.0
    %1012 = vmatprep.subr.mxu0 0.0
    %1013 = vmatpush2.msra.mxu0 0.0
    %1014 = vmatprep.subr.mxu0 0.0
    %1015 = vmatpush2.msra.mxu0 0.0
    %1016 = vmatprep.mubr.f32.mxu0 0.0
    %1017 = vmatmul.mubr.f32.gmra.mxu0 %v950
    %v1018 = vpop.f32.mrf.mxu0
    %v1019 = vadd.f32 0.0, %v1018
    %v1020 = vpop.f32.mrf.mxu0
    %1021 = vdwg.mxu0
    %v1022 = vadd.f32 %v245, %v1019
    %v1023 = vxor.u32 %v1022, 2147483648
    %v1024 = vmul.f32 %v1023, 1.442695
    %v1025 = vpow.pop %v1024
    %v1026 = vadd.f32 %v1025, 1.0
    %v1027 = vrcp.pop %v1026
    %v1028 = vmul.f32 1.0, %v1027
    %v1029 = vtanh.pop %v1022
    %v1030 = vmul.f32 %v1028, %v940
    %1032 = vrot.lane.b32.xlu0 %v1029, 64
    %v1033 = vpop.permute.xlu0 %1032
    %v1035 = vmul.f32 %v1028, %v1033
    %1037 = vrot.lane.b32.xlu0 %v1035, 32
    %v1038 = vpop.permute.xlu0 %1037
    %v1040 = vadd.f32 %v1030, %v1038
    %v1041 = vtanh.pop %v1040
    %1043 = vrot.lane.b32.xlu0 %v1041, 64
    %v1044 = vpop.permute.xlu0 %1043
    %v1046 = vmul.f32 %v1028, %v1044
    %1048 = vrot.lane.b32.xlu0 %v446, 64
    %v1049 = vpop.permute.xlu0 %1048
    %1051 = vrot.lane.b32.xlu0 %v546, 96
    %v1052 = vpop.permute.xlu0 %1051
    %1055 = vrot.lane.b32.xlu0 %v846, 64
    %v1056 = vpop.permute.xlu0 %1055
    %1058 = vrot.lane.b32.xlu0 %v946, 96
    %v1059 = vpop.permute.xlu0 %1058
    %v1061 = vsel %vm248, %v349, %v1049
    %vm1062 = vcmask 523264
    %v1063 = vsel %vm1062, %v1061, %v1052
    %vm1064 = vcmask 785408
    %v1065 = vsel %vm1064, %v1063, %v646
    %v1066 = vsel %vm248, %v749, %v1056
    %v1067 = vsel %vm1062, %v1066, %v1059
    %v1068 = vsel %vm1064, %v1067, %v1046
    %1069 = vst [vmem:[#allocation5] sm:$0xff] %v1065
    %1070 = vst [vmem:[#allocation5 + $0x8] sm:$0xff] %v1068
    // Predicated region
    $region26: #{tpu_custom_call.1} parent=1 // pred_check
      _
    $region27: #{tpu_custom_call.1} parent=1 // pred_check_branch
      %1072 = sbr.rel (0) target = $region29
    $region28: #{tpu_custom_call.1} parent=1 // pred_region
      _
    $region29: #{tpu_custom_call.1} parent=1 // pred_fallthru
      _
    // Predicated region
    $region30: #{tpu_custom_call.1} parent=1 // pred_check
      _
    $region31: #{tpu_custom_call.1} parent=1 // pred_check_branch
      %1074 = sbr.rel (0) target = $region33
    $region32: #{tpu_custom_call.1} parent=1 // pred_region
      %s1076 = ssub.s32 256, 256
      %1077 = vsyncadd [#allocation3], %s1076
      %s1079 = sshll.u32 [#allocation5], 4
      %s1080 = int_to_ptr.vmem [resolvable:$true] %s1079
      %1082 = dma.vmem_to_hbm [thread:$0]  %s1080, 256, %s6, [#allocation3]
    $region33: #{tpu_custom_call.1} parent=1 // pred_fallthru
      _
    // Predicated region
    $region34: #{tpu_custom_call.1} parent=1 // pred_check
      _
    $region35: #{tpu_custom_call.1} parent=1 // pred_check_branch
      %1084 = sbr.rel (0) target = $region37
    $region36: #{tpu_custom_call.1} parent=1 // pred_region
      _
    $region37: #{tpu_custom_call.1} parent=1 // pred_fallthru
      _
    // Predicated region
    $region38: #{tpu_custom_call.1} parent=1 // pred_check
      _
    $region39: #{tpu_custom_call.1} parent=1 // pred_check_branch
      %1086 = sbr.rel (0) target = $region41
    $region40: #{tpu_custom_call.1} parent=1 // pred_region
      %1087 = dma.done [#allocation3], 256
    $region41: #{tpu_custom_call.1} parent=1 // pred_fallthru
      _
    %1088 = vsyncpa [#allocation3], 1
    %1089 = vsyncpa [#allocation4], 1

</llo_original>
